<compile_context>
chip_gen: v7x
topology: tpu7x:2x2x1
jax: 0.10.0
libtpu: 0.0.40
codegen_flags: <defaults>
</compile_context>

<pallas_src>
import functools

import jax
import jax.numpy as jnp
from jax.experimental import pallas as pl
from jax.experimental.pallas import tpu as pltpu


def _round_up(x, m):
    return (x + m - 1) // m * m


def _choose_tb(batch, seq_pad, tb_target=256, max_rows=4096):
    """Pick the batch tile: big enough to amortize grid-step overhead, small enough to
    fit v7x's VMEM, clamped to the real batch, multiple of 8, grid >= 2 when possible."""
    tb = min(tb_target, max(8, (max_rows // seq_pad) // 8 * 8))
    tb = min(tb, _round_up(batch, 8))          # don't pad tiny batches many-fold
    tb = max(8, tb // 8 * 8)
    # Prefer >= 2 grid steps so the "parallel" batch axis can shard across v7x's 2 TCs.
    while tb > 8 and _round_up(batch, tb) // tb < 2:
        tb = max(8, (tb // 2) // 8 * 8)
    return tb


def _cnn_kernel(tb, seq_pad,
                x_ref, w_ref, b_conv_ref, mask_ref, w_lin_ref, b_lin_ref,
                out_ref):
    """One batch tile: fused conv (single K=128 matmul) -> ReLU -> masked max-pool
    -> linear -> softmax."""
    # Single full-depth MXU pass: (tb*seq_pad, fs_max*emb) @ (fs_max*emb, n_pad).
    acc = jnp.dot(x_ref[...], w_ref[...], preferred_element_type=jnp.float32)
    act = jnp.maximum(acc + b_conv_ref[...], 0.0)               # ReLU, (nrows, n_pad)

    # Mask invalid conv positions / padded rows AFTER ReLU (exact: ReLU >= 0), then
    # max-pool over the sequence axis.  Mask is untiled (seq_pad, n_pad) and broadcast.
    act3 = act.reshape(tb, seq_pad, -1) * mask_ref[...][None, :, :]
    pooled = jnp.max(act3, axis=1)                              # (tb, n_pad)

    # dropout == identity at inference.  Linear + softmax; padded logit columns have a
    # -1e30 bias so exp() kills them.
    logits = jnp.dot(pooled.astype(w_lin_ref.dtype), w_lin_ref[...],
                     preferred_element_type=jnp.float32) + b_lin_ref[...]
    m = jnp.max(logits, axis=-1, keepdims=True)
    e = jnp.exp(logits - m)
    inv = pl.reciprocal(jnp.sum(e, axis=-1, keepdims=True), approx=True)
    out_ref[...] = (e * inv).astype(out_ref.dtype)


def prepare_cnn_params(conv_ws_pt, conv_bs_pt, lin_w_pt, lin_b_pt,
                       filter_sizes, n_filters, embedding_dim, seq, output_dim):
    """Re-pack PyTorch-layout parameters into the fused / lane-padded kernel layout."""
    fs_max = max(filter_sizes)
    n_total = len(filter_sizes) * n_filters
    n_pad = _round_up(n_total, 128)
    out_pad = _round_up(output_dim, 128)
    seq_pad = _round_up(seq, 8)

    # Per-tap fused conv weight (fs_max, emb, n_pad); taps >= fs (and pad cols) are zero.
    w_tap = jnp.zeros((fs_max, embedding_dim, n_pad), jnp.float32)
    b_conv = jnp.zeros((1, n_pad), jnp.float32)
    for j, (w_pt, b_pt, fs) in enumerate(zip(conv_ws_pt, conv_bs_pt, filter_sizes)):
        # PyTorch Conv2d weight (nf, 1, fs, emb) -> (fs, emb, nf)
        w_j = jnp.transpose(w_pt[:, 0, :, :], (1, 2, 0))
        w_tap = w_tap.at[:fs, :, j * n_filters:(j + 1) * n_filters].set(w_j)
        b_conv = b_conv.at[0, j * n_filters:(j + 1) * n_filters].set(b_pt)
    # Flatten taps along K: row (i*emb + e) <-> (tap i, emb dim e); matches the
    # wrapper-side im2col lane layout.  One (fs_max*emb, n_pad) matmul operand.
    w_flat = w_tap.reshape(fs_max * embedding_dim, n_pad)

    # Validity mask over conv positions: position l is valid for column c iff
    # l < seq - fs(c) + 1; padded columns are never valid.  Single (seq_pad, n_pad).
    vlen = []
    for fs in filter_sizes:
        vlen += [seq - fs + 1] * n_filters
    vlen += [0] * (n_pad - n_total)
    vlen = jnp.asarray(vlen, jnp.int32)
    mask = (jnp.arange(seq_pad)[:, None] < vlen[None, :]).astype(jnp.float32)

    # Padded linear: zero rows for pad features, -1e30 bias on pad logits.
    w_lin = jnp.zeros((n_pad, out_pad), jnp.float32)
    w_lin = w_lin.at[:n_total, :output_dim].set(jnp.transpose(lin_w_pt))
    b_lin = jnp.full((1, out_pad), -1e30, jnp.float32)
    b_lin = b_lin.at[0, :output_dim].set(lin_b_pt)

    return dict(
        w_flat=w_flat.astype(jnp.bfloat16), b_conv=b_conv, mask=mask,
        w_lin=w_lin.astype(jnp.bfloat16), b_lin=b_lin,
        fs_max=fs_max, seq_pad=seq_pad, n_pad=n_pad, out_pad=out_pad)


def cnn_forward(embedded, params, output_dim, *, tb_target=256):
    batch, seq, emb = embedded.shape
    fs_max = params["fs_max"]
    seq_pad = params["seq_pad"]
    out_pad = params["out_pad"]
    k_dim = fs_max * emb

    tb = _choose_tb(batch, seq_pad, tb_target)
    batch_pad = _round_up(batch, tb)

    # Wrapper-side tap-im2col (plain JAX glue): pad batch + sequence, then lay the
    # fs_max taps along the lane axis so the kernel does ONE K = fs_max*emb contraction.
    x = embedded.astype(jnp.bfloat16)
    x = jnp.pad(x, ((0, batch_pad - batch), (0, seq_pad + fs_max - 1 - seq), (0, 0)))
    x_taps = jnp.concatenate([x[:, i:i + seq_pad, :] for i in range(fs_max)], axis=-1)
    x2 = x_taps.reshape(batch_pad * seq_pad, k_dim)           # flat (rows, 128) bf16 slab

    kernel = functools.partial(_cnn_kernel, tb, seq_pad)
    out = pl.pallas_call(
        kernel,
        out_shape=jax.ShapeDtypeStruct((batch_pad, out_pad), jnp.float32),
        grid=(batch_pad // tb,),
        in_specs=[
            pl.BlockSpec((tb * seq_pad, k_dim), lambda i: (i, 0)),
            # Constant index_maps: these blocks are DMA'd once, not re-fetched per step.
            pl.BlockSpec(params["w_flat"].shape, lambda i: (0, 0)),
            pl.BlockSpec(params["b_conv"].shape, lambda i: (0, 0)),
            pl.BlockSpec(params["mask"].shape, lambda i: (0, 0)),
            pl.BlockSpec(params["w_lin"].shape, lambda i: (0, 0)),
            pl.BlockSpec(params["b_lin"].shape, lambda i: (0, 0)),
        ],
        # Per-grid-step, lane-dense (128-wide) output blocks -> safe to mark the batch
        # axis "parallel" (megacore sharding on v7x; neutral on v5e/v6e).
        out_specs=pl.BlockSpec((tb, out_pad), lambda i: (i, 0)),
        compiler_params=pltpu.CompilerParams(
            dimension_semantics=("parallel",),
            # Explicit VMEM budget: with nrows capped ~4K the working set (bf16 x tile
            # x2 buffers + a few (nrows,128) f32 intermediates) is well under 32 MiB,
            # which fits every generation's scoped/physical limit (incl. v7x's 64 MiB).
            vmem_limit_bytes=32 * 1024 * 1024),
    )(x2, params["w_flat"], params["b_conv"], params["mask"],
      params["w_lin"], params["b_lin"])
    return out[:batch, :output_dim]


if __name__ == "__main__":
    # Small shapes consistent with the module's forward.
    vocab_size, embedding_dim = 50, 32
    n_filters = 16
    filter_sizes = (2, 3, 4)
    output_dim = 3
    batch, seq = 10, 8            # tb auto-clamps to 8 -> grid of 2; exercises padding

    key = jax.random.PRNGKey(0)
    keys = jax.random.split(key, 4 + 2 * len(filter_sizes))

    text = jax.random.randint(keys[0], (batch, seq), 0, vocab_size, dtype=jnp.int32)
    emb_table = jax.random.normal(keys[1], (vocab_size, embedding_dim), jnp.float32) * 0.1

    conv_ws_pt, conv_bs_pt = [], []
    for n, fs in enumerate(filter_sizes):
        # PyTorch Conv2d layout (n_filters, 1, fs, emb)
        w_pt = jax.random.normal(keys[2 + 2 * n], (n_filters, 1, fs, embedding_dim), jnp.float32) * 0.1
        b_pt = jax.random.normal(keys[3 + 2 * n], (n_filters,), jnp.float32) * 0.1
        conv_ws_pt.append(w_pt)
        conv_bs_pt.append(b_pt)

    n_total = len(filter_sizes) * n_filters
    lin_w_pt = jax.random.normal(keys[-2], (output_dim, n_total), jnp.float32) * 0.1  # PyTorch Linear layout
    lin_b_pt = jax.random.normal(keys[-1], (output_dim,), jnp.float32) * 0.1

    # Embedding lookup (a gather) is glue; kept in plain JAX.
    embedded = emb_table[text]                                # (batch, seq, emb) f32

    params = prepare_cnn_params(conv_ws_pt, conv_bs_pt, lin_w_pt, lin_b_pt,
                                filter_sizes, n_filters, embedding_dim, seq, output_dim)
    out = cnn_forward(embedded, params, output_dim)
    out = jax.block_until_ready(out)

    # Pure-JAX reference (PyTorch forward semantics, same bf16-input / f32-accumulate
    # numerics as the kernel so the comparison is tight).
    def ref_forward(embedded_f32):
        x = embedded_f32.astype(jnp.bfloat16)
        pooled = []
        for w_pt, b_pt, fs in zip(conv_ws_pt, conv_bs_pt, filter_sizes):
            w = jnp.transpose(w_pt[:, 0, :, :], (1, 2, 0)).astype(jnp.bfloat16)  # (fs, emb, nf)
            L = seq - fs + 1
            conv = jnp.zeros((batch, L, n_filters), jnp.float32)
            for i in range(fs):
                conv = conv + jnp.einsum("ble,ef->blf", x[:, i:i + L, :], w[i],
                                         preferred_element_type=jnp.float32)
            act = jnp.maximum(conv + b_pt[None, None, :], 0.0)
            pooled.append(jnp.max(act, axis=1))
        cat = jnp.concatenate(pooled, axis=1)                 # dropout == identity
        lin_w = jnp.transpose(lin_w_pt).astype(jnp.bfloat16)
        logits = jnp.dot(cat.astype(jnp.bfloat16), lin_w,
                         preferred_element_type=jnp.float32) + lin_b_pt[None, :]
        return jax.nn.softmax(logits, axis=1)

    ref = ref_forward(embedded)
    assert out.shape == (batch, output_dim), out.shape
    # Tolerance covers bf16 operand rounding + approximate EUP reciprocal in softmax.
    assert jnp.allclose(out, ref, atol=5e-3, rtol=5e-3), (out, ref)
    print("KERNEL_OK")
</pallas_src>

<mosaic_0001>
module attributes {stable_mosaic.version = 11 : i64} {
  func.func @_cnn_kernel(%arg0: i32, %arg1: memref<64x128xbf16, #tpu.memory_space<vmem>>, %arg2: memref<128x128xbf16, #tpu.memory_space<vmem>>, %arg3: memref<1x128xf32, #tpu.memory_space<vmem>>, %arg4: memref<8x128xf32, #tpu.memory_space<vmem>>, %arg5: memref<128x128xbf16, #tpu.memory_space<vmem>>, %arg6: memref<1x128xf32, #tpu.memory_space<vmem>>, %arg7: memref<8x128xf32, #tpu.memory_space<vmem>>) attributes {dimension_semantics = [#tpu.dimension_semantics<parallel>], iteration_bounds = array<i64: 2>, scalar_prefetch = 0 : i64, scratch_operands = 0 : i64, tpu.core_type = #tpu.core_type<tc>, window_params = [{transform_indices = @transform_0, window_bounds = array<i64: 64, 128>}, {pipeline_mode = #tpu.pipeline_mode<synchronous>, transform_indices = @transform_1, window_bounds = array<i64: 128, 128>}, {pipeline_mode = #tpu.pipeline_mode<synchronous>, transform_indices = @transform_2, window_bounds = array<i64: 1, 128>}, {pipeline_mode = #tpu.pipeline_mode<synchronous>, transform_indices = @transform_3, window_bounds = array<i64: 8, 128>}, {pipeline_mode = #tpu.pipeline_mode<synchronous>, transform_indices = @transform_4, window_bounds = array<i64: 128, 128>}, {pipeline_mode = #tpu.pipeline_mode<synchronous>, transform_indices = @transform_5, window_bounds = array<i64: 1, 128>}, {transform_indices = @transform_6, window_bounds = array<i64: 8, 128>}]} {
    %c0 = arith.constant 0 : index
    %c0_0 = arith.constant 0 : index
    %0 = vector.load %arg1[%c0, %c0_0] : memref<64x128xbf16, #tpu.memory_space<vmem>>, vector<64x128xbf16>
    %c0_1 = arith.constant 0 : index
    %c0_2 = arith.constant 0 : index
    %1 = vector.load %arg2[%c0_1, %c0_2] : memref<128x128xbf16, #tpu.memory_space<vmem>>, vector<128x128xbf16>
    %cst = arith.constant dense<0.000000e+00> : vector<64x128xf32>
    %2 = tpu.matmul %0, %1, %cst {dimension_numbers = #tpu.dot_dimension_numbers<[1], [0], [0], [1], [0, 0, 1, 1], [], []>} : vector<64x128xbf16>, vector<128x128xbf16>, vector<64x128xf32> -> vector<64x128xf32>
    %c0_3 = arith.constant 0 : index
    %c0_4 = arith.constant 0 : index
    %3 = vector.load %arg3[%c0_3, %c0_4] : memref<1x128xf32, #tpu.memory_space<vmem>>, vector<1x128xf32>
    %4 = vector.broadcast %3 : vector<1x128xf32> to vector<64x128xf32>
    %5 = arith.addf %2, %4 : vector<64x128xf32>
    %cst_5 = arith.constant 0.000000e+00 : f32
    %6 = vector.broadcast %cst_5 : f32 to vector<64x128xf32>
    %7 = arith.maximumf %5, %6 : vector<64x128xf32>
    %8 = vector.shape_cast %7 : vector<64x128xf32> to vector<8x8x128xf32>
    %c0_6 = arith.constant 0 : index
    %c0_7 = arith.constant 0 : index
    %9 = vector.load %arg4[%c0_6, %c0_7] : memref<8x128xf32, #tpu.memory_space<vmem>>, vector<8x128xf32>
    %10 = vector.shape_cast %9 : vector<8x128xf32> to vector<1x8x128xf32>
    %11 = vector.broadcast %10 : vector<1x8x128xf32> to vector<8x8x128xf32>
    %12 = arith.mulf %8, %11 : vector<8x8x128xf32>
    %cst_8 = arith.constant dense<0xFF800000> : vector<8x128xf32>
    %13 = vector.multi_reduction <maximumf>, %12, %cst_8 [1] : vector<8x8x128xf32> to vector<8x128xf32>
    %14 = arith.truncf %13 : vector<8x128xf32> to vector<8x128xbf16>
    %c0_9 = arith.constant 0 : index
    %c0_10 = arith.constant 0 : index
    %15 = vector.load %arg5[%c0_9, %c0_10] : memref<128x128xbf16, #tpu.memory_space<vmem>>, vector<128x128xbf16>
    %cst_11 = arith.constant dense<0.000000e+00> : vector<8x128xf32>
    %16 = tpu.matmul %14, %15, %cst_11 {dimension_numbers = #tpu.dot_dimension_numbers<[1], [0], [0], [1], [0, 0, 1, 1], [], []>} : vector<8x128xbf16>, vector<128x128xbf16>, vector<8x128xf32> -> vector<8x128xf32>
    %c0_12 = arith.constant 0 : index
    %c0_13 = arith.constant 0 : index
    %17 = vector.load %arg6[%c0_12, %c0_13] : memref<1x128xf32, #tpu.memory_space<vmem>>, vector<1x128xf32>
    %18 = vector.broadcast %17 : vector<1x128xf32> to vector<8x128xf32>
    %19 = arith.addf %16, %18 : vector<8x128xf32>
    %cst_14 = arith.constant dense<0xFF800000> : vector<8xf32>
    %20 = vector.multi_reduction <maximumf>, %19, %cst_14 [1] : vector<8x128xf32> to vector<8xf32>
    %21 = vector.shape_cast %20 : vector<8xf32> to vector<8x1xf32>
    %22 = vector.broadcast %21 : vector<8x1xf32> to vector<8x128xf32>
    %23 = arith.subf %19, %22 : vector<8x128xf32>
    %24 = math.exp %23 : vector<8x128xf32>
    %cst_15 = arith.constant dense<0.000000e+00> : vector<8xf32>
    %25 = vector.multi_reduction <add>, %24, %cst_15 [1] : vector<8x128xf32> to vector<8xf32>
    %26 = vector.shape_cast %25 : vector<8xf32> to vector<8x1xf32>
    %27 = tpu.reciprocal %26 {approx = true} : vector<8x1xf32> -> vector<8x1xf32>
    %28 = vector.broadcast %27 : vector<8x1xf32> to vector<8x128xf32>
    %29 = arith.mulf %24, %28 : vector<8x128xf32>
    %c0_16 = arith.constant 0 : index
    %c0_17 = arith.constant 0 : index
    %30 = vector.load %arg7[%c0_16, %c0_17] : memref<8x128xf32, #tpu.memory_space<vmem>>, vector<8x128xf32>
    tpu.vector_store %arg7[%c0_16, %c0_17], %29 {strides = array<i32>} : memref<8x128xf32, #tpu.memory_space<vmem>>, vector<8x128xf32>,
    return
  }
  func.func @transform_0(%arg0: i32) -> (i32, i32) {
    %c0_i32 = arith.constant 0 : i32
    %c0_i32_0 = arith.constant 0 : i32
    return %arg0, %c0_i32 : i32, i32
  }
  func.func @transform_1(%arg0: i32) -> (i32, i32) {
    %c0_i32 = arith.constant 0 : i32
    %c0_i32_0 = arith.constant 0 : i32
    %c0_i32_1 = arith.constant 0 : i32
    return %c0_i32, %c0_i32_0 : i32, i32
  }
  func.func @transform_2(%arg0: i32) -> (i32, i32) {
    %c0_i32 = arith.constant 0 : i32
    %c0_i32_0 = arith.constant 0 : i32
    %c0_i32_1 = arith.constant 0 : i32
    return %c0_i32, %c0_i32_0 : i32, i32
  }
  func.func @transform_3(%arg0: i32) -> (i32, i32) {
    %c0_i32 = arith.constant 0 : i32
    %c0_i32_0 = arith.constant 0 : i32
    %c0_i32_1 = arith.constant 0 : i32
    return %c0_i32, %c0_i32_0 : i32, i32
  }
  func.func @transform_4(%arg0: i32) -> (i32, i32) {
    %c0_i32 = arith.constant 0 : i32
    %c0_i32_0 = arith.constant 0 : i32
    %c0_i32_1 = arith.constant 0 : i32
    return %c0_i32, %c0_i32_0 : i32, i32
  }
  func.func @transform_5(%arg0: i32) -> (i32, i32) {
    %c0_i32 = arith.constant 0 : i32
    %c0_i32_0 = arith.constant 0 : i32
    %c0_i32_1 = arith.constant 0 : i32
    return %c0_i32, %c0_i32_0 : i32, i32
  }
  func.func @transform_6(%arg0: i32) -> (i32, i32) {
    %c0_i32 = arith.constant 0 : i32
    %c0_i32_0 = arith.constant 0 : i32
    return %arg0, %c0_i32 : i32, i32
  }
}

</mosaic_0001>

<llo_original>
// kernel: tpu_custom_call.1
$region0: #{tpu_custom_call.1}
  #allocation0 [shape = 'u32[]', space=smem, size = 0x4, offset = 0x4, fixed_abs, tag = 'smem constant byte address 0x4 - core index']
  #allocation1 [shape = 'u32[144,128]{1,0:T(1,128)}', space=vmem, size = 0x12000, scoped, tag = 'internal scratch']
  %s0 = inlined_call_operand.hbm [shape: bf16[128,128], index: 0, kind: input, shape index: {}]
  %s1 = inlined_call_operand.hbm [shape: bf16[128,128], index: 1, kind: input, shape index: {}]
  %s2 = inlined_call_operand.vmem [shape: f32[1,128], index: 2, kind: input, shape index: {}]
  %s3 = inlined_call_operand.vmem [shape: f32[8,128], index: 3, kind: input, shape index: {}]
  %s4 = inlined_call_operand.hbm [shape: bf16[128,128], index: 4, kind: input, shape index: {}]
  %s5 = inlined_call_operand.vmem [shape: f32[1,128], index: 5, kind: input, shape index: {}]
  %s6 = inlined_call_operand.hbm [shape: f32[16,128], index: 6, kind: output, shape index: {}]
  %s7 = sld [smem:[#allocation0]]
  $region69: #{tpu_custom_call.1} parent=0
    _
  %s9 = ssub.s32 1, %s7
  %s10 = scalar_select 0, %s9, %s7
  $region1: #{tpu_custom_call.1} parent=0
    #allocation2 [shape = 'u8[32768]{0}', space=vmem, size = 0x8000, scoped, tag = 'input window, operand 0']
    #allocation3 [shape = 's32[2]{0}', space=sflag, size = 0x8, scoped, tag = 'scoped memory for tpu_custom_call.1']
    #allocation4 [shape = 's32[2]{0}', space=sflag, size = 0x8, scoped, tag = 'scoped memory for tpu_custom_call.1']
    #allocation5 [shape = 'u8[32768]{0}', space=vmem, size = 0x8000, scoped, tag = 'input window, operand 1, single buffered']
    #allocation6 [shape = 's32[1]{0}', space=sflag, size = 0x4, scoped, tag = 'scoped memory for tpu_custom_call.1']
    #allocation7 [shape = 'u8[32768]{0}', space=vmem, size = 0x8000, scoped, tag = 'input window, operand 4, single buffered']
    #allocation8 [shape = 'u8[8192]{0}', space=vmem, size = 0x2000, scoped, tag = 'output window, operand 0']
    %11 = vsyncpa [#allocation3], 0
    %s12 = scalar_lea.sflag [#allocation3], 1
    %13 = vsyncpa %s12, 0
    %14 = vsyncpa [#allocation6], 0
    %15 = vsyncpa [#allocation4], 0
    %s16 = scalar_lea.sflag [#allocation4], 1
    %17 = vsyncpa %s16, 0
    loop: start=0, step=1, limit=4
    $region2: #{tpu_custom_call.1} parent=1 // loop_pre_header
      _
    $region3: #{tpu_custom_call.1} parent=1 // loop_header
      %s19 = sphi 0, %s23
      %p20 = scmp.ge.s32.totalorder %s19, 4
      %s29 = sphi 0, %s31
      %s32 = sphi 0, %s29
      %s33 = sphi 0, %s32
      %s49 = sphi 0, %s33
      %s53 = sphi 0, %s53
      %s55 = sphi 0, %s53
      %s56 = sphi 0, %s55
      %s70 = sphi 0, %s56
      %s74 = sphi 0, %s74
      %s76 = sphi 0, %s74
      %s77 = sphi 0, %s76
      %s91 = sphi 0, %s77
      %s95 = sphi 0, %s95
      %s97 = sphi 0, %s95
      %s98 = sphi 0, %s97
      %s112 = sphi 0, %s98
      %s116 = sphi 0, %s116
      %s118 = sphi 0, %s116
      %s119 = sphi 0, %s118
      %s133 = sphi 0, %s119
      %s137 = sphi 0, %s137
      %s139 = sphi 0, %s137
      %s140 = sphi 0, %s139
      %s154 = sphi 0, %s140
      %s160 = sphi 0, %s162
      %s163 = sphi 0, %s160
      %s164 = sphi 0, %s163
      %s180 = sphi 0, %s164
    $region4: #{tpu_custom_call.1} parent=1 // loop_header_branch
      %22 = sbr.rel (%p20) target = $region8
    $region5: #{tpu_custom_call.1} parent=1 // loop_body
      %s24 = ssub.s32 %s19, 1
      %s25 = ssub.s32 %s19, 2
      %s26 = sadd.s32 %s19, 1
      %s27 = ssub.s32 %s19, %s26
      %p28 = scmp.eq.s32.totalorder %s27, 0
      %s30 = sadd.s32 %s29, 1
      %s31 = scalar_select %p28, %s29, %s30
      %p34 = pneg %p28
      %p35 = scmp.eq.s32.totalorder %s19, 1
      %p36 = por %p34, %p35
      %p37 = scmp.ne.s32.totalorder %s29, %s32
      %p38 = scmp.eq.s32.totalorder %s19, 0
      %p39 = por %p37, %p38
      %p40 = scmp.ne.s32.totalorder %s29, %s32
      %p41 = scmp.eq.s32.totalorder %s24, 1
      %p42 = por %p40, %p41
      %p43 = scmp.ne.s32.totalorder %s32, %s33
      %p44 = scmp.eq.s32.totalorder %s24, 0
      %p45 = por %p43, %p44
      %p46 = scmp.ne.s32.totalorder %s32, %s33
      %p47 = scmp.eq.s32.totalorder %s25, 1
      %p48 = por %p46, %p47
      %p50 = scmp.ne.s32.totalorder %s33, %s49
      %p51 = scmp.eq.s32.totalorder %s25, 0
      %p52 = por %p50, %p51
      %s54 = sadd.s32 %s53, 1
      %p57 = scmp.eq.s32.totalorder %s19, 1
      %p58 = scmp.ne.s32.totalorder %s53, %s55
      %p59 = scmp.eq.s32.totalorder %s19, 0
      %p60 = por %p58, %p59
      %p61 = scmp.ne.s32.totalorder %s53, %s55
      %p62 = scmp.eq.s32.totalorder %s24, 1
      %p63 = por %p61, %p62
      %p64 = scmp.ne.s32.totalorder %s55, %s56
      %p65 = scmp.eq.s32.totalorder %s24, 0
      %p66 = por %p64, %p65
      %p67 = scmp.ne.s32.totalorder %s55, %s56
      %p68 = scmp.eq.s32.totalorder %s25, 1
      %p69 = por %p67, %p68
      %p71 = scmp.ne.s32.totalorder %s56, %s70
      %p72 = scmp.eq.s32.totalorder %s25, 0
      %p73 = por %p71, %p72
      %s75 = sadd.s32 %s74, 1
      %p78 = scmp.eq.s32.totalorder %s19, 1
      %p79 = scmp.ne.s32.totalorder %s74, %s76
      %p80 = scmp.eq.s32.totalorder %s19, 0
      %p81 = por %p79, %p80
      %p82 = scmp.ne.s32.totalorder %s74, %s76
      %p83 = scmp.eq.s32.totalorder %s24, 1
      %p84 = por %p82, %p83
      %p85 = scmp.ne.s32.totalorder %s76, %s77
      %p86 = scmp.eq.s32.totalorder %s24, 0
      %p87 = por %p85, %p86
      %p88 = scmp.ne.s32.totalorder %s76, %s77
      %p89 = scmp.eq.s32.totalorder %s25, 1
      %p90 = por %p88, %p89
      %p92 = scmp.ne.s32.totalorder %s77, %s91
      %p93 = scmp.eq.s32.totalorder %s25, 0
      %p94 = por %p92, %p93
      %s96 = sadd.s32 %s95, 1
      %p99 = scmp.eq.s32.totalorder %s19, 1
      %p100 = scmp.ne.s32.totalorder %s95, %s97
      %p101 = scmp.eq.s32.totalorder %s19, 0
      %p102 = por %p100, %p101
      %p103 = scmp.ne.s32.totalorder %s95, %s97
      %p104 = scmp.eq.s32.totalorder %s24, 1
      %p105 = por %p103, %p104
      %p106 = scmp.ne.s32.totalorder %s97, %s98
      %p107 = scmp.eq.s32.totalorder %s24, 0
      %p108 = por %p106, %p107
      %p109 = scmp.ne.s32.totalorder %s97, %s98
      %p110 = scmp.eq.s32.totalorder %s25, 1
      %p111 = por %p109, %p110
      %p113 = scmp.ne.s32.totalorder %s98, %s112
      %p114 = scmp.eq.s32.totalorder %s25, 0
      %p115 = por %p113, %p114
      %s117 = sadd.s32 %s116, 1
      %p120 = scmp.eq.s32.totalorder %s19, 1
      %p121 = scmp.ne.s32.totalorder %s116, %s118
      %p122 = scmp.eq.s32.totalorder %s19, 0
      %p123 = por %p121, %p122
      %p124 = scmp.ne.s32.totalorder %s116, %s118
      %p125 = scmp.eq.s32.totalorder %s24, 1
      %p126 = por %p124, %p125
      %p127 = scmp.ne.s32.totalorder %s118, %s119
      %p128 = scmp.eq.s32.totalorder %s24, 0
      %p129 = por %p127, %p128
      %p130 = scmp.ne.s32.totalorder %s118, %s119
      %p131 = scmp.eq.s32.totalorder %s25, 1
      %p132 = por %p130, %p131
      %p134 = scmp.ne.s32.totalorder %s119, %s133
      %p135 = scmp.eq.s32.totalorder %s25, 0
      %p136 = por %p134, %p135
      %s138 = sadd.s32 %s137, 1
      %p141 = scmp.eq.s32.totalorder %s19, 1
      %p142 = scmp.ne.s32.totalorder %s137, %s139
      %p143 = scmp.eq.s32.totalorder %s19, 0
      %p144 = por %p142, %p143
      %p145 = scmp.ne.s32.totalorder %s137, %s139
      %p146 = scmp.eq.s32.totalorder %s24, 1
      %p147 = por %p145, %p146
      %p148 = scmp.ne.s32.totalorder %s139, %s140
      %p149 = scmp.eq.s32.totalorder %s24, 0
      %p150 = por %p148, %p149
      %p151 = scmp.ne.s32.totalorder %s139, %s140
      %p152 = scmp.eq.s32.totalorder %s25, 1
      %p153 = por %p151, %p152
      %p155 = scmp.ne.s32.totalorder %s140, %s154
      %p156 = scmp.eq.s32.totalorder %s25, 0
      %p157 = por %p155, %p156
      %s158 = ssub.s32 %s19, %s26
      %p159 = scmp.eq.s32.totalorder %s158, 0
      %s161 = sadd.s32 %s160, 1
      %s162 = scalar_select %p159, %s160, %s161
      %p165 = pneg %p159
      %p166 = scmp.eq.s32.totalorder %s19, 1
      %p167 = por %p165, %p166
      %p168 = scmp.ne.s32.totalorder %s160, %s163
      %p169 = scmp.eq.s32.totalorder %s19, 0
      %p170 = por %p168, %p169
      %p171 = scmp.ne.s32.totalorder %s160, %s163
      %p172 = scmp.eq.s32.totalorder %s24, 1
      %p173 = por %p171, %p172
      %p174 = scmp.ne.s32.totalorder %s163, %s164
      %p175 = scmp.eq.s32.totalorder %s24, 0
      %p176 = por %p174, %p175
      %p177 = scmp.ne.s32.totalorder %s163, %s164
      %p178 = scmp.eq.s32.totalorder %s25, 1
      %p179 = por %p177, %p178
      %p181 = scmp.ne.s32.totalorder %s164, %s180
      %p182 = scmp.eq.s32.totalorder %s25, 0
      %p183 = por %p181, %p182
      %p184 = scmp.le.s32.totalorder 1, %s19
      %p185 = scmp.lt.s32.totalorder %s19, 3
      %p186 = pnand %p184, %p185
      %p187 = pneg %p186
      // Predicated region
      $region9: #{tpu_custom_call.1} parent=5 // pred_check
        _
      $region10: #{tpu_custom_call.1} parent=5 // pred_check_branch
        %189 = sbr.rel (%p186) target = $region12
      $region11: #{tpu_custom_call.1} parent=5 // pred_region
        %s190 = ssub.s32 %s19, 1
        // Predicated region
        $region13: #{tpu_custom_call.1} parent=11 // pred_check
          %p191 = pneg %p66
        $region14: #{tpu_custom_call.1} parent=11 // pred_check_branch
          %193 = sbr.rel (%p191) target = $region16
        $region15: #{tpu_custom_call.1} parent=11 // pred_region
          %s195 = ssub.s32 1024, 1024
          %196 = vsyncadd [#allocation6], %s195
          %s197 = sshll.u32 [#allocation5], 4
          %s198 = int_to_ptr.vmem [resolvable:$true] %s197
          %203 = dma.hbm_to_vmem [thread:$0]  %s1, 1024, %s198, [#allocation6], 64, 64, 4
        $region16: #{tpu_custom_call.1} parent=11 // pred_fallthru
          _
        // Predicated region
        $region17: #{tpu_custom_call.1} parent=11 // pred_check
          %p204 = pneg %p87
        $region18: #{tpu_custom_call.1} parent=11 // pred_check_branch
          %206 = sbr.rel (%p204) target = $region20
        $region19: #{tpu_custom_call.1} parent=11 // pred_region
          _
        $region20: #{tpu_custom_call.1} parent=11 // pred_fallthru
          _
        // Predicated region
        $region21: #{tpu_custom_call.1} parent=11 // pred_check
          %p207 = pneg %p108
        $region22: #{tpu_custom_call.1} parent=11 // pred_check_branch
          %209 = sbr.rel (%p207) target = $region24
        $region23: #{tpu_custom_call.1} parent=11 // pred_region
          _
        $region24: #{tpu_custom_call.1} parent=11 // pred_fallthru
          _
        // Predicated region
        $region25: #{tpu_custom_call.1} parent=11 // pred_check
          %p210 = pneg %p129
        $region26: #{tpu_custom_call.1} parent=11 // pred_check_branch
          %212 = sbr.rel (%p210) target = $region28
        $region27: #{tpu_custom_call.1} parent=11 // pred_region
          %s214 = ssub.s32 1024, 1024
          %215 = vsyncadd [#allocation6], %s214
          %s216 = sshll.u32 [#allocation7], 4
          %s217 = int_to_ptr.vmem [resolvable:$true] %s216
          %222 = dma.hbm_to_vmem [thread:$0]  %s4, 1024, %s217, [#allocation6], 64, 64, 4
        $region28: #{tpu_custom_call.1} parent=11 // pred_fallthru
          _
        // Predicated region
        $region29: #{tpu_custom_call.1} parent=11 // pred_check
          %p223 = pneg %p150
        $region30: #{tpu_custom_call.1} parent=11 // pred_check_branch
          %225 = sbr.rel (%p223) target = $region32
        $region31: #{tpu_custom_call.1} parent=11 // pred_region
          _
        $region32: #{tpu_custom_call.1} parent=11 // pred_fallthru
          _
      $region12: #{tpu_custom_call.1} parent=5 // pred_fallthru
        _
      %p226 = scmp.lt.s32.totalorder %s19, 2
      // Predicated region
      $region33: #{tpu_custom_call.1} parent=5 // pred_check
        %p227 = pneg %p226
      $region34: #{tpu_custom_call.1} parent=5 // pred_check_branch
        %229 = sbr.rel (%p227) target = $region36
      $region35: #{tpu_custom_call.1} parent=5 // pred_region
        // Predicated region
        $region37: #{tpu_custom_call.1} parent=35 // pred_check
          %p230 = pneg %p39
        $region38: #{tpu_custom_call.1} parent=35 // pred_check_branch
          %232 = sbr.rel (%p230) target = $region40
        $region39: #{tpu_custom_call.1} parent=35 // pred_region
          %s233 = sand.u32 %s29, 1
          %s234 = scalar_lea.sflag [#allocation3], %s233
          %s235 = sand.u32 %s29, 1
          %s236 = smul.addr %s235, 32
          %s237 = scalar_lea.vmem [#allocation2], %s236
          %s238 = smul.u32 8, %s19
          %s240 = ssub.s32 512, 512
          %241 = vsyncadd %s234, %s240
          %s242 = smul.addr %s238, 64
          %s243 = scalar_lea.hbm %s0, %s242
          %s244 = sshll.u32 %s237, 4
          %s245 = int_to_ptr.vmem [resolvable:$true] %s244
          %250 = dma.hbm_to_vmem [thread:$0]  %s243, 512, %s245, %s234, 64, 64, 4
        $region40: #{tpu_custom_call.1} parent=35 // pred_fallthru
          _
      $region36: #{tpu_custom_call.1} parent=5 // pred_fallthru
        _
      %p251 = scmp.le.s32.totalorder 1, %s19
      %p252 = scmp.lt.s32.totalorder %s19, 3
      %p253 = pnand %p251, %p252
      %p254 = pneg %p253
      // Predicated region
      $region41: #{tpu_custom_call.1} parent=5 // pred_check
        _
      $region42: #{tpu_custom_call.1} parent=5 // pred_check_branch
        %256 = sbr.rel (%p253) target = $region44
      $region43: #{tpu_custom_call.1} parent=5 // pred_region
        %s257 = ssub.s32 %s19, 1
        %s258 = sand.u32 %s32, 1
        %s259 = scalar_lea.sflag [#allocation3], %s258
        %s260 = sand.u32 %s32, 1
        %s261 = smul.addr %s260, 32
        %s262 = scalar_lea.vmem [#allocation2], %s261
        // Predicated region
        $region45: #{tpu_custom_call.1} parent=43 // pred_check
          %p263 = pneg %p45
        $region46: #{tpu_custom_call.1} parent=43 // pred_check_branch
          %265 = sbr.rel (%p263) target = $region48
        $region47: #{tpu_custom_call.1} parent=43 // pred_region
          %266 = dma.done %s259, 512
        $region48: #{tpu_custom_call.1} parent=43 // pred_fallthru
          _
        // Predicated region
        $region49: #{tpu_custom_call.1} parent=43 // pred_check
          %p267 = pneg %p66
        $region50: #{tpu_custom_call.1} parent=43 // pred_check_branch
          %269 = sbr.rel (%p267) target = $region52
        $region51: #{tpu_custom_call.1} parent=43 // pred_region
          %270 = dma.done [#allocation6], 1024
        $region52: #{tpu_custom_call.1} parent=43 // pred_fallthru
          _
        // Predicated region
        $region53: #{tpu_custom_call.1} parent=43 // pred_check
          %p271 = pneg %p129
        $region54: #{tpu_custom_call.1} parent=43 // pred_check_branch
          %273 = sbr.rel (%p271) target = $region56
        $region55: #{tpu_custom_call.1} parent=43 // pred_region
          %274 = dma.done [#allocation6], 1024
        $region56: #{tpu_custom_call.1} parent=43 // pred_fallthru
          _
        %s275 = sand.u32 %s32, 1
        %s276 = scalar_lea.sflag [#allocation3], %s275
        %s277 = sand.u32 %s32, 1
        %s278 = smul.addr %s277, 32
        %s279 = scalar_lea.vmem [#allocation2], %s278
        %p280 = pneg %p45
        %p281 = pneg %p42
        %p282 = pneg %p66
        %p283 = pneg %p63
        %p284 = pneg %p87
        %p285 = pneg %p84
        %p286 = pneg %p108
        %p287 = pneg %p105
        %p288 = pneg %p129
        %p289 = pneg %p126
        %p290 = pneg %p150
        %p291 = pneg %p147
        %p292 = pneg %p176
        %p293 = pneg %p173
        %s294 = sand.u32 %s163, 1
        %s295 = scalar_lea.sflag [#allocation4], %s294
        %s296 = sand.u32 %s163, 1
        %s297 = smul.addr %s296, 8
        %s298 = scalar_lea.vmem [#allocation8], %s297
        %s299 = smul.u32 8, %s24
        %v301 = vld [vmem:[%s262] sm:$0xf]
        %v302 = vld [vmem:[%s262 + $0x4] sm:$0xf]
        %v303 = vld [vmem:[%s262 + $0x8] sm:$0xf]
        %v304 = vld [vmem:[%s262 + $0xc] sm:$0xf]
        %v305 = vld [vmem:[%s262 + $0x10] sm:$0xf]
        %v306 = vld [vmem:[%s262 + $0x14] sm:$0xf]
        %v307 = vld [vmem:[%s262 + $0x18] sm:$0xf]
        %v308 = vld [vmem:[%s262 + $0x1c] sm:$0xf]
        %v309 = vld [vmem:[#allocation5] sm:$0xf]
        %v310 = vld [vmem:[#allocation5 + $0x4] sm:$0xf]
        %v311 = vld [vmem:[#allocation5 + $0x8] sm:$0xf]
        %v312 = vld [vmem:[#allocation5 + $0xc] sm:$0xf]
        %v313 = vld [vmem:[#allocation5 + $0x10] sm:$0xf]
        %v314 = vld [vmem:[#allocation5 + $0x14] sm:$0xf]
        %v315 = vld [vmem:[#allocation5 + $0x18] sm:$0xf]
        %v316 = vld [vmem:[#allocation5 + $0x1c] sm:$0xf]
        %v317 = vld [vmem:[#allocation5 + $0x20] sm:$0xf]
        %v318 = vld [vmem:[#allocation5 + $0x24] sm:$0xf]
        %v319 = vld [vmem:[#allocation5 + $0x28] sm:$0xf]
        %v320 = vld [vmem:[#allocation5 + $0x2c] sm:$0xf]
        %v321 = vld [vmem:[#allocation5 + $0x30] sm:$0xf]
        %v322 = vld [vmem:[#allocation5 + $0x34] sm:$0xf]
        %v323 = vld [vmem:[#allocation5 + $0x38] sm:$0xf]
        %v324 = vld [vmem:[#allocation5 + $0x3c] sm:$0xf]
        %v325 = vld [vmem:[%s2] sm:$0x1]
        %v327 = vlaneseq
        %v328 = vshrl.u32 %v327, 7
        %v329 = vsub.s32 0, %v328
        %v330 = vrot.slane %v325, %v329
        %v340 = vunpack.c.l.b16 %v301
        %v341 = vunpack.c.l.b16 %v302
        %v342 = vunpack.c.l.b16 %v303
        %v343 = vunpack.c.l.b16 %v304
        %v344 = vunpack.c.l.b16 %v305
        %v345 = vunpack.c.l.b16 %v306
        %v346 = vunpack.c.l.b16 %v307
        %v347 = vunpack.c.l.b16 %v308
        %v348 = vpack.c.b16 %v341, %v340
        %v349 = vpack.c.b16 %v343, %v342
        %v350 = vpack.c.b16 %v345, %v344
        %v351 = vpack.c.b16 %v347, %v346
        %v372 = vunpack.c.l.b16 %v309
        %v373 = vunpack.c.l.b16 %v310
        %v374 = vunpack.c.l.b16 %v311
        %v375 = vunpack.c.l.b16 %v312
        %v376 = vunpack.c.l.b16 %v313
        %v377 = vunpack.c.l.b16 %v314
        %v378 = vunpack.c.l.b16 %v315
        %v379 = vunpack.c.l.b16 %v316
        %v380 = vunpack.c.l.b16 %v317
        %v381 = vunpack.c.l.b16 %v318
        %v382 = vunpack.c.l.b16 %v319
        %v383 = vunpack.c.l.b16 %v320
        %v384 = vunpack.c.l.b16 %v321
        %v385 = vunpack.c.l.b16 %v322
        %v386 = vunpack.c.l.b16 %v323
        %v387 = vunpack.c.l.b16 %v324
        %v388 = vpack.c.b16 %v373, %v372
        %v389 = vpack.c.b16 %v375, %v374
        %v390 = vpack.c.b16 %v377, %v376
        %v391 = vpack.c.b16 %v379, %v378
        %v392 = vpack.c.b16 %v381, %v380
        %v393 = vpack.c.b16 %v383, %v382
        %v394 = vpack.c.b16 %v385, %v384
        %v395 = vpack.c.b16 %v387, %v386
        %404 = vmatprep.subr.bf16.mxu0 0
        %405 = vmatpush1.bf16.msra.mxu0 %v388
        %406 = vmatprep.subr.bf16.mxu0 0
        %407 = vmatpush1.bf16.msra.mxu0 %v389
        %408 = vmatprep.subr.bf16.mxu0 0
        %409 = vmatpush1.bf16.msra.mxu0 %v390
        %410 = vmatprep.subr.bf16.mxu0 0
        %411 = vmatpush1.bf16.msra.mxu0 %v391
        %412 = vmatprep.subr.bf16.mxu0 0
        %413 = vmatpush1.bf16.msra.mxu0 %v392
        %414 = vmatprep.subr.bf16.mxu0 0
        %415 = vmatpush1.bf16.msra.mxu0 %v393
        %416 = vmatprep.subr.bf16.mxu0 0
        %417 = vmatpush1.bf16.msra.mxu0 %v394
        %418 = vmatprep.subr.bf16.mxu0 0
        %419 = vmatpush1.bf16.msra.mxu0 %v395
        %420 = vmatprep.subr.bf16.mxu0 0
        %421 = vmatpush1.bf16.msra.mxu0 0
        %422 = vmatprep.subr.bf16.mxu0 0
        %423 = vmatpush1.bf16.msra.mxu0 0
        %424 = vmatprep.subr.bf16.mxu0 0
        %425 = vmatpush1.bf16.msra.mxu0 0
        %426 = vmatprep.subr.bf16.mxu0 0
        %427 = vmatpush1.bf16.msra.mxu0 0
        %428 = vmatprep.subr.bf16.mxu0 0
        %429 = vmatpush1.bf16.msra.mxu0 0
        %430 = vmatprep.subr.bf16.mxu0 0
        %431 = vmatpush1.bf16.msra.mxu0 0
        %432 = vmatprep.subr.bf16.mxu0 0
        %433 = vmatpush1.bf16.msra.mxu0 0
        %434 = vmatprep.subr.bf16.mxu0 0
        %435 = vmatpush1.bf16.msra.mxu0 0
        %436 = vmatprep.mubr.bf16.mxu0 0
        %437 = vmatmul.mubr.bf16.gmra.mrb[0].mxu0 %v348
        %v438 = vpop.f32.mrb[0].mxu0
        %v439 = vadd.f32 %v330, %v438
        %v440 = vpop.f32.mrb[0].mxu0
        %v441 = vpop.f32.mrb[0].mxu0
        %v442 = vadd.f32 %v330, %v441
        %v443 = vpop.f32.mrb[0].mxu0
        %444 = vmatprep.mubr.bf16.mxu0 0
        %445 = vmatmul.mubr.bf16.gmra.mrb[0].mxu0 %v349
        %v446 = vpop.f32.mrb[0].mxu0
        %v447 = vadd.f32 %v330, %v446
        %v448 = vpop.f32.mrb[0].mxu0
        %v449 = vpop.f32.mrb[0].mxu0
        %v450 = vadd.f32 %v330, %v449
        %v451 = vpop.f32.mrb[0].mxu0
        %452 = vmatprep.mubr.bf16.mxu0 0
        %453 = vmatmul.mubr.bf16.gmra.mrb[0].mxu0 %v350
        %v454 = vpop.f32.mrb[0].mxu0
        %v455 = vadd.f32 %v330, %v454
        %v456 = vpop.f32.mrb[0].mxu0
        %v457 = vpop.f32.mrb[0].mxu0
        %v458 = vadd.f32 %v330, %v457
        %v459 = vpop.f32.mrb[0].mxu0
        %460 = vmatprep.mubr.bf16.mxu0 0
        %461 = vmatmul.mubr.bf16.gmra.mrb[0].mxu0 %v351
        %v462 = vpop.f32.mrb[0].mxu0
        %v463 = vadd.f32 %v330, %v462
        %v464 = vpop.f32.mrb[0].mxu0
        %v465 = vpop.f32.mrb[0].mxu0
        %v466 = vadd.f32 %v330, %v465
        %v467 = vpop.f32.mrb[0].mxu0
        %468 = vdwg.mxu0
        %v469 = vmax.f32 %v439, 0.0
        %v470 = vmax.f32 %v442, 0.0
        %v471 = vmax.f32 %v447, 0.0
        %v472 = vmax.f32 %v450, 0.0
        %v473 = vmax.f32 %v455, 0.0
        %v474 = vmax.f32 %v458, 0.0
        %v475 = vmax.f32 %v463, 0.0
        %v476 = vmax.f32 %v466, 0.0
        %v477 = vld [vmem:[%s3] sm:$0xff]
        %v478 = vmul.f32 %v469, %v477
        %v479 = vmul.f32 %v470, %v477
        %v480 = vmul.f32 %v471, %v477
        %v481 = vmul.f32 %v472, %v477
        %v482 = vmul.f32 %v473, %v477
        %v483 = vmul.f32 %v474, %v477
        %v484 = vmul.f32 %v475, %v477
        %v485 = vmul.f32 %v476, %v477
        %v486 = vrot.slane %v478, 4
        %v487 = vmax.f32 %v478, %v486
        %v488 = vrot.slane %v487, 2
        %v489 = vmax.f32 %v487, %v488
        %v490 = vrot.slane %v489, 1
        %v491 = vmax.f32 %v489, %v490
        %v492 = vrot.slane %v479, 4
        %v493 = vmax.f32 %v479, %v492
        %v494 = vrot.slane %v493, 2
        %v495 = vmax.f32 %v493, %v494
        %v496 = vrot.slane %v495, 1
        %v497 = vmax.f32 %v495, %v496
        %v498 = vrot.slane %v480, 4
        %v499 = vmax.f32 %v480, %v498
        %v500 = vrot.slane %v499, 2
        %v501 = vmax.f32 %v499, %v500
        %v502 = vrot.slane %v501, 1
        %v503 = vmax.f32 %v501, %v502
        %v504 = vrot.slane %v481, 4
        %v505 = vmax.f32 %v481, %v504
        %v506 = vrot.slane %v505, 2
        %v507 = vmax.f32 %v505, %v506
        %v508 = vrot.slane %v507, 1
        %v509 = vmax.f32 %v507, %v508
        %v510 = vrot.slane %v482, 4
        %v511 = vmax.f32 %v482, %v510
        %v512 = vrot.slane %v511, 2
        %v513 = vmax.f32 %v511, %v512
        %v514 = vrot.slane %v513, 1
        %v515 = vmax.f32 %v513, %v514
        %v516 = vrot.slane %v483, 4
        %v517 = vmax.f32 %v483, %v516
        %v518 = vrot.slane %v517, 2
        %v519 = vmax.f32 %v517, %v518
        %v520 = vrot.slane %v519, 1
        %v521 = vmax.f32 %v519, %v520
        %v522 = vrot.slane %v484, 4
        %v523 = vmax.f32 %v484, %v522
        %v524 = vrot.slane %v523, 2
        %v525 = vmax.f32 %v523, %v524
        %v526 = vrot.slane %v525, 1
        %v527 = vmax.f32 %v525, %v526
        %v528 = vrot.slane %v485, 4
        %v529 = vmax.f32 %v485, %v528
        %v530 = vrot.slane %v529, 2
        %v531 = vmax.f32 %v529, %v530
        %v532 = vrot.slane %v531, 1
        %v533 = vmax.f32 %v531, %v532
        %v534 = vpack.c.bf16 %v491, %v491
        %v535 = vpack.c.bf16 %v497, %v497
        %v536 = vpack.c.bf16 %v503, %v503
        %v537 = vpack.c.bf16 %v509, %v509
        %v538 = vpack.c.bf16 %v515, %v515
        %v539 = vpack.c.bf16 %v521, %v521
        %v540 = vpack.c.bf16 %v527, %v527
        %v541 = vpack.c.bf16 %v533, %v533
        %v542 = vld [vmem:[#allocation7] sm:$0xf]
        %v543 = vld [vmem:[#allocation7 + $0x4] sm:$0xf]
        %v544 = vld [vmem:[#allocation7 + $0x8] sm:$0xf]
        %v545 = vld [vmem:[#allocation7 + $0xc] sm:$0xf]
        %v546 = vld [vmem:[#allocation7 + $0x10] sm:$0xf]
        %v547 = vld [vmem:[#allocation7 + $0x14] sm:$0xf]
        %v548 = vld [vmem:[#allocation7 + $0x18] sm:$0xf]
        %v549 = vld [vmem:[#allocation7 + $0x1c] sm:$0xf]
        %v550 = vld [vmem:[#allocation7 + $0x20] sm:$0xf]
        %v551 = vld [vmem:[#allocation7 + $0x24] sm:$0xf]
        %v552 = vld [vmem:[#allocation7 + $0x28] sm:$0xf]
        %v553 = vld [vmem:[#allocation7 + $0x2c] sm:$0xf]
        %v554 = vld [vmem:[#allocation7 + $0x30] sm:$0xf]
        %v555 = vld [vmem:[#allocation7 + $0x34] sm:$0xf]
        %v556 = vld [vmem:[#allocation7 + $0x38] sm:$0xf]
        %v557 = vld [vmem:[#allocation7 + $0x3c] sm:$0xf]
        %v558 = vld [vmem:[%s5] sm:$0x1]
        %v560 = vlaneseq
        %v561 = vshrl.u32 %v560, 7
        %v562 = vsub.s32 0, %v561
        %v563 = vrot.slane %v558, %v562
        %v573 = vunpack.c.l.b16 %v534
        %v574 = vunpack.c.l.b16 %v535
        %v575 = vunpack.c.l.b16 %v536
        %v576 = vunpack.c.l.b16 %v537
        %v577 = vunpack.c.l.b16 %v538
        %v578 = vunpack.c.l.b16 %v539
        %v579 = vunpack.c.l.b16 %v540
        %v580 = vunpack.c.l.b16 %v541
        %vm581 = vcmask 1041409
        %v582 = vsel %vm581, %v574, %v573
        %vm583 = vcmask 1042434
        %v584 = vsel %vm583, %v575, %v582
        %vm585 = vcmask 1043459
        %v586 = vsel %vm585, %v576, %v584
        %vm587 = vcmask 1044484
        %v588 = vsel %vm587, %v577, %v586
        %vm589 = vcmask 1045509
        %v590 = vsel %vm589, %v578, %v588
        %vm591 = vcmask 1046534
        %v592 = vsel %vm591, %v579, %v590
        %vm593 = vcmask 1047559
        %v594 = vsel %vm593, %v580, %v592
        %v595 = vpack.c.b16 %v594, %v594
        %v613 = vunpack.c.l.b16 %v542
        %v614 = vunpack.c.l.b16 %v543
        %v615 = vunpack.c.l.b16 %v544
        %v616 = vunpack.c.l.b16 %v545
        %v617 = vunpack.c.l.b16 %v546
        %v618 = vunpack.c.l.b16 %v547
        %v619 = vunpack.c.l.b16 %v548
        %v620 = vunpack.c.l.b16 %v549
        %v621 = vunpack.c.l.b16 %v550
        %v622 = vunpack.c.l.b16 %v551
        %v623 = vunpack.c.l.b16 %v552
        %v624 = vunpack.c.l.b16 %v553
        %v625 = vunpack.c.l.b16 %v554
        %v626 = vunpack.c.l.b16 %v555
        %v627 = vunpack.c.l.b16 %v556
        %v628 = vunpack.c.l.b16 %v557
        %v629 = vpack.c.b16 %v614, %v613
        %v630 = vpack.c.b16 %v616, %v615
        %v631 = vpack.c.b16 %v618, %v617
        %v632 = vpack.c.b16 %v620, %v619
        %v633 = vpack.c.b16 %v622, %v621
        %v634 = vpack.c.b16 %v624, %v623
        %v635 = vpack.c.b16 %v626, %v625
        %v636 = vpack.c.b16 %v628, %v627
        %645 = vmatprep.subr.bf16.mxu0 0
        %646 = vmatpush1.bf16.msra.mxu0 %v629
        %647 = vmatprep.subr.bf16.mxu0 0
        %648 = vmatpush1.bf16.msra.mxu0 %v630
        %649 = vmatprep.subr.bf16.mxu0 0
        %650 = vmatpush1.bf16.msra.mxu0 %v631
        %651 = vmatprep.subr.bf16.mxu0 0
        %652 = vmatpush1.bf16.msra.mxu0 %v632
        %653 = vmatprep.subr.bf16.mxu0 0
        %654 = vmatpush1.bf16.msra.mxu0 %v633
        %655 = vmatprep.subr.bf16.mxu0 0
        %656 = vmatpush1.bf16.msra.mxu0 %v634
        %657 = vmatprep.subr.bf16.mxu0 0
        %658 = vmatpush1.bf16.msra.mxu0 %v635
        %659 = vmatprep.subr.bf16.mxu0 0
        %660 = vmatpush1.bf16.msra.mxu0 %v636
        %661 = vmatprep.subr.bf16.mxu0 0
        %662 = vmatpush1.bf16.msra.mxu0 0
        %663 = vmatprep.subr.bf16.mxu0 0
        %664 = vmatpush1.bf16.msra.mxu0 0
        %665 = vmatprep.subr.bf16.mxu0 0
        %666 = vmatpush1.bf16.msra.mxu0 0
        %667 = vmatprep.subr.bf16.mxu0 0
        %668 = vmatpush1.bf16.msra.mxu0 0
        %669 = vmatprep.subr.bf16.mxu0 0
        %670 = vmatpush1.bf16.msra.mxu0 0
        %671 = vmatprep.subr.bf16.mxu0 0
        %672 = vmatpush1.bf16.msra.mxu0 0
        %673 = vmatprep.subr.bf16.mxu0 0
        %674 = vmatpush1.bf16.msra.mxu0 0
        %675 = vmatprep.subr.bf16.mxu0 0
        %676 = vmatpush1.bf16.msra.mxu0 0
        %677 = vmatprep.mubr.bf16.mxu0 0
        %678 = vmatmul.mubr.bf16.gmra.mrb[0].mxu0 %v595
        %v679 = vpop.f32.mrb[0].mxu0
        %v680 = vadd.f32 %v563, %v679
        %v681 = vpop.f32.mrb[0].mxu0
        %v682 = vpop.f32.mrb[0].mxu0
        %v683 = vpop.f32.mrb[0].mxu0
        %684 = vdwg.mxu0
        %685 = vmax.xlane.f32.xlu0 %v680
        %v686 = vpop.xlane.xlu0 %685
        %v687 = vsub.f32 %v680, %v686
        %v688 = vmul.f32 %v687, 1.442695
        %v689 = vpow.pop %v688
        %690 = vadd.xlane.f32.xlu0 %v689
        %v691 = vpop.xlane.xlu0 %690
        %v692 = vrcp.pop %v691
        %v693 = vmul.f32 %v689, %v692
        %694 = vst [vmem:[%s298] sm:$0xff] %v693
        %s695 = sand.u32 %s163, 1
        %s696 = scalar_lea.sflag [#allocation4], %s695
        %s697 = sand.u32 %s163, 1
        %s698 = smul.addr %s697, 8
        %s699 = scalar_lea.vmem [#allocation8], %s698
        // Predicated region
        $region57: #{tpu_custom_call.1} parent=43 // pred_check
          %p700 = pneg %p173
        $region58: #{tpu_custom_call.1} parent=43 // pred_check_branch
          %702 = sbr.rel (%p700) target = $region60
        $region59: #{tpu_custom_call.1} parent=43 // pred_region
          %s704 = ssub.s32 128, 128
          %705 = vsyncadd %s696, %s704
          %s706 = smul.addr %s24, 128
          %s707 = scalar_lea.hbm %s6, %s706
          %s709 = sshll.u32 %s699, 4
          %s710 = int_to_ptr.vmem [resolvable:$true] %s709
          %712 = dma.vmem_to_hbm [thread:$0]  %s710, 128, %s707, %s696
        $region60: #{tpu_custom_call.1} parent=43 // pred_fallthru
          _
      $region44: #{tpu_custom_call.1} parent=5 // pred_fallthru
        _
      %p713 = scmp.le.s32.totalorder 2, %s19
      // Predicated region
      $region61: #{tpu_custom_call.1} parent=5 // pred_check
        %p714 = pneg %p713
      $region62: #{tpu_custom_call.1} parent=5 // pred_check_branch
        %716 = sbr.rel (%p714) target = $region64
      $region63: #{tpu_custom_call.1} parent=5 // pred_region
        %s717 = ssub.s32 %s19, 2
        // Predicated region
        $region65: #{tpu_custom_call.1} parent=63 // pred_check
          %p718 = pneg %p179
        $region66: #{tpu_custom_call.1} parent=63 // pred_check_branch
          %720 = sbr.rel (%p718) target = $region68
        $region67: #{tpu_custom_call.1} parent=63 // pred_region
          %s721 = sand.u32 %s164, 1
          %s722 = scalar_lea.sflag [#allocation4], %s721
          %s723 = sand.u32 %s164, 1
          %s724 = smul.addr %s723, 8
          %s725 = scalar_lea.vmem [#allocation8], %s724
          %726 = dma.done %s722, 128
        $region68: #{tpu_custom_call.1} parent=63 // pred_fallthru
          _
      $region64: #{tpu_custom_call.1} parent=5 // pred_fallthru
        _
    $region6: #{tpu_custom_call.1} parent=1 // loop_footer
      %s23 = sadd.s32 1, %s19
    $region7: #{tpu_custom_call.1} parent=1 // loop_footer_branch
      %18 = sbr.rel target = $region3
    $region8: #{tpu_custom_call.1} parent=1 // loop_exit
      _
    %727 = vsyncpa [#allocation3], 1
    %s728 = scalar_lea.sflag [#allocation3], 1
    %729 = vsyncpa %s728, 1
    %730 = vsyncpa [#allocation6], 1
    %731 = vsyncpa [#allocation4], 1
    %s732 = scalar_lea.sflag [#allocation4], 1
    %733 = vsyncpa %s732, 1

</llo_original>
